<compile_context>
chip_gen: v7x
topology: tpu7x:2x2x1
jax: 0.10.0
libtpu: 0.0.40
codegen_flags: <defaults>
</compile_context>

<pallas_src>
import functools

import jax
import jax.numpy as jnp
from jax import lax
from jax.experimental import pallas as pl
from jax.experimental.pallas import tpu as pltpu

EPS = 1e-5
NEG_SLOPE = 0.01          # nn.LeakyReLU() default
LANES = 128
SUBLANES = 8
TM_TARGET = 512           # large M tiles (>=512 rows) amortize per-step overhead


def _round_up(x, m):
    return (x + m - 1) // m * m


def convblock_kernel(p_ref, w_ref, gamma_ref, beta_ref, o_ref,
                     sum_ref, sumsq_ref, scale_ref, shift_ref, *, inv_m):
    """grid = (2, n_tiles): axis 0 = pass (0 stats, 1 normalize), axis 1 = M tile."""
    pass_idx = pl.program_id(0)
    tile_idx = pl.program_id(1)

    # Conv tile on the MXU: bf16 x bf16 -> f32 accumulate.
    y = jnp.dot(p_ref[...], w_ref[...], preferred_element_type=jnp.float32)

    @pl.when(jnp.logical_and(pass_idx == 0, tile_idx == 0))
    def _init():
        sum_ref[...] = jnp.zeros_like(sum_ref)
        sumsq_ref[...] = jnp.zeros_like(sumsq_ref)

    @pl.when(pass_idx == 0)
    def _accumulate():
        # Zero-padded M rows / channels / K columns contribute exactly 0 here.
        sum_ref[...] += jnp.sum(y, axis=0, keepdims=True)
        sumsq_ref[...] += jnp.sum(y * y, axis=0, keepdims=True)

    @pl.when(jnp.logical_and(pass_idx == 1, tile_idx == 0))
    def _finalize_stats():
        mean = sum_ref[...] * inv_m                                    # true M, not padded
        var = jnp.maximum(sumsq_ref[...] * inv_m - mean * mean, 0.0)   # biased variance
        rstd = lax.rsqrt(var + EPS)
        scale = gamma_ref[...] * rstd
        scale_ref[...] = scale
        shift_ref[...] = beta_ref[...] - mean * scale

    @pl.when(pass_idx == 1)
    def _normalize_and_store():
        y_hat = y * scale_ref[...] + shift_ref[...]
        o_ref[...] = jnp.where(y_hat >= 0, y_hat, NEG_SLOPE * y_hat).astype(o_ref.dtype)


def im2col(x, kh, kw, stride, padding):
    """x: (N, C, H, W) -> P: (N*H_out*W_out, C*kh*kw), c-major then kh, kw (matches OIHW reshape)."""
    N, C, H, W = x.shape
    Hp, Wp = H + 2 * padding, W + 2 * padding
    H_out = (Hp - kh) // stride + 1
    W_out = (Wp - kw) // stride + 1
    xp = jnp.pad(x, ((0, 0), (0, 0), (padding, padding), (padding, padding)))
    cols = []
    for i in range(kh):
        for j in range(kw):
            cols.append(xp[:, :,
                           i:i + stride * (H_out - 1) + 1:stride,
                           j:j + stride * (W_out - 1) + 1:stride])     # (N, C, Ho, Wo)
    P = jnp.stack(cols, axis=2)                                        # (N, C, kh*kw, Ho, Wo)
    P = P.transpose(0, 3, 4, 1, 2).reshape(N * H_out * W_out, C * kh * kw)
    return P, H_out, W_out


def conv_block_forward(x, weight, gamma, beta, *, stride=2, padding=1):
    """x: (N, C_in, H, W) NCHW, weight: (C_out, C_in, KH, KW). Returns NCHW f32 output."""
    N, C_in, H, W = x.shape
    C_out, _, KH, KW = weight.shape

    # Patches in bf16 (halves HBM footprint of the materialized im2col matrix).
    P, H_out, W_out = im2col(x.astype(jnp.bfloat16), KH, KW, stride, padding)
    M, K = P.shape

    # Lane-dense padding.
    K_pad = _round_up(K, LANES)
    C_pad = _round_up(C_out, LANES)
    if M <= TM_TARGET:
        tm = _round_up(M, SUBLANES)
        M_pad = tm
    else:
        tm = TM_TARGET
        M_pad = _round_up(M, tm)
    n_tiles = M_pad // tm

    P = jnp.pad(P, ((0, M_pad - M), (0, K_pad - K)))                       # zero rows/cols
    W_mat = weight.reshape(C_out, K).T.astype(jnp.bfloat16)                # (K, C_out)
    W_mat = jnp.pad(W_mat, ((0, K_pad - K), (0, C_pad - C_out)))
    gamma2 = jnp.pad(gamma.astype(jnp.float32).reshape(1, C_out),
                     ((0, 0), (0, C_pad - C_out)))
    beta2 = jnp.pad(beta.astype(jnp.float32).reshape(1, C_out),
                    ((0, 0), (0, C_pad - C_out)))

    kernel = functools.partial(convblock_kernel, inv_m=1.0 / M)

    grid_spec = pltpu.PrefetchScalarGridSpec(
        num_scalar_prefetch=0,
        grid=(2, n_tiles),                                     # (pass, M tile)
        in_specs=[
            pl.BlockSpec((tm, K_pad), lambda p, i: (i, 0)),          # P tile (pipelined)
            pl.BlockSpec((K_pad, C_pad), lambda p, i: (0, 0)),       # W resident in VMEM
            pl.BlockSpec((1, C_pad), lambda p, i: (0, 0)),           # gamma
            pl.BlockSpec((1, C_pad), lambda p, i: (0, 0)),           # beta
        ],
        # Pass 0 never stores: pin every pass-0 step to block 0 so nothing is written
        # back to HBM until pass 1 produces real data for each tile.
        out_specs=pl.BlockSpec((tm, C_pad), lambda p, i: (i * p, 0)),
        scratch_shapes=[
            pltpu.VMEM((1, C_pad), jnp.float32),   # per-channel sum
            pltpu.VMEM((1, C_pad), jnp.float32),   # per-channel sum of squares
            pltpu.VMEM((1, C_pad), jnp.float32),   # scale = gamma * rstd
            pltpu.VMEM((1, C_pad), jnp.float32),   # shift = beta - mean * scale
        ],
    )

    out_flat = pl.pallas_call(
        kernel,
        out_shape=jax.ShapeDtypeStruct((M_pad, C_pad), jnp.float32),
        grid_spec=grid_spec,
        compiler_params=pltpu.CompilerParams(
            # M-tile axis carries the BN-stats reduction through shared VMEM scratch,
            # so it must stay "arbitrary" (no megacore sharding of the stats).
            dimension_semantics=("arbitrary", "arbitrary"),
            vmem_limit_bytes=32 * 1024 * 1024,   # safe on v7x (64 MiB phys), raises v5e default
        ),
    )(P, W_mat, gamma2, beta2)

    out = out_flat[:M, :C_out].reshape(N, H_out, W_out, C_out)
    return out.transpose(0, 3, 1, 2)   # NCHW to match the PyTorch module contract


def reference_forward(x, weight, gamma, beta, *, stride=2, padding=1):
    """Pure-JAX reference (same bf16 input quantization, f32 accumulate) for validation."""
    y = lax.conv_general_dilated(
        x.astype(jnp.bfloat16), weight.astype(jnp.bfloat16),
        window_strides=(stride, stride),
        padding=[(padding, padding), (padding, padding)],
        dimension_numbers=("NCHW", "OIHW", "NCHW"),
        preferred_element_type=jnp.float32)
    mean = y.mean(axis=(0, 2, 3), keepdims=True)
    var = y.var(axis=(0, 2, 3), keepdims=True)                    # biased
    y_hat = (y - mean) * lax.rsqrt(var + EPS)
    y_hat = y_hat * gamma.reshape(1, -1, 1, 1) + beta.reshape(1, -1, 1, 1)
    return jnp.where(y_hat >= 0, y_hat, NEG_SLOPE * y_hat)


if __name__ == "__main__":
    key = jax.random.PRNGKey(0)
    k_x, k_w = jax.random.split(key)

    # Small shapes consistent with the module.
    N, C_in, H, W = 2, 4, 16, 16
    C_out, KH, KW = 8, 5, 5
    stride, padding = 2, 1

    x = jax.random.normal(k_x, (N, C_in, H, W), dtype=jnp.float32)

    # Deterministic kaiming_normal_ (fan_in, gain=sqrt(2)) conv weight.
    fan_in = C_in * KH * KW
    std = (2.0 / fan_in) ** 0.5
    weight = jax.random.normal(k_w, (C_out, C_in, KH, KW), dtype=jnp.float32) * std

    # BatchNorm2d affine params at their defaults.
    gamma = jnp.ones((C_out,), dtype=jnp.float32)
    beta = jnp.zeros((C_out,), dtype=jnp.float32)

    out = conv_block_forward(x, weight, gamma, beta, stride=stride, padding=padding)
    out = jax.block_until_ready(out)

    ref = reference_forward(x, weight, gamma, beta, stride=stride, padding=padding)
    assert out.shape == ref.shape, (out.shape, ref.shape)
    # bf16 MXU inputs in both paths; tolerance covers accumulation-order differences.
    assert jnp.allclose(out, ref, atol=2e-3, rtol=2e-3), \
        float(jnp.max(jnp.abs(out - ref)))

    print("KERNEL_OK")
</pallas_src>

<mosaic_0001>
module attributes {stable_mosaic.version = 11 : i64} {
  func.func @convblock_kernel(%arg0: i32, %arg1: i32, %arg2: memref<104x128xbf16, #tpu.memory_space<vmem>>, %arg3: memref<128x128xbf16, #tpu.memory_space<vmem>>, %arg4: memref<1x128xf32, #tpu.memory_space<vmem>>, %arg5: memref<1x128xf32, #tpu.memory_space<vmem>>, %arg6: memref<104x128xf32, #tpu.memory_space<vmem>>, %arg7: memref<1x128xf32, #tpu.memory_space<vmem>>, %arg8: memref<1x128xf32, #tpu.memory_space<vmem>>, %arg9: memref<1x128xf32, #tpu.memory_space<vmem>>, %arg10: memref<1x128xf32, #tpu.memory_space<vmem>>) attributes {dimension_semantics = [#tpu.dimension_semantics<arbitrary>, #tpu.dimension_semantics<arbitrary>], iteration_bounds = array<i64: 2, 1>, scalar_prefetch = 0 : i64, scratch_operands = 4 : i64, tpu.core_type = #tpu.core_type<tc>, window_params = [{transform_indices = @transform_0, window_bounds = array<i64: 104, 128>}, {pipeline_mode = #tpu.pipeline_mode<synchronous>, transform_indices = @transform_1, window_bounds = array<i64: 128, 128>}, {pipeline_mode = #tpu.pipeline_mode<synchronous>, transform_indices = @transform_2, window_bounds = array<i64: 1, 128>}, {pipeline_mode = #tpu.pipeline_mode<synchronous>, transform_indices = @transform_3, window_bounds = array<i64: 1, 128>}, {transform_indices = @transform_4, window_bounds = array<i64: 104, 128>}]} {
    %c0 = arith.constant 0 : index
    %c0_0 = arith.constant 0 : index
    %0 = vector.load %arg2[%c0, %c0_0] : memref<104x128xbf16, #tpu.memory_space<vmem>>, vector<104x128xbf16>
    %c0_1 = arith.constant 0 : index
    %c0_2 = arith.constant 0 : index
    %1 = vector.load %arg3[%c0_1, %c0_2] : memref<128x128xbf16, #tpu.memory_space<vmem>>, vector<128x128xbf16>
    %cst = arith.constant dense<0.000000e+00> : vector<104x128xf32>
    %2 = tpu.matmul %0, %1, %cst {dimension_numbers = #tpu.dot_dimension_numbers<[1], [0], [0], [1], [0, 0, 1, 1], [], []>} : vector<104x128xbf16>, vector<128x128xbf16>, vector<104x128xf32> -> vector<104x128xf32>
    %c0_i32 = arith.constant 0 : i32
    %3 = arith.cmpi eq, %arg0, %c0_i32 : i32
    %c0_i32_3 = arith.constant 0 : i32
    %4 = arith.cmpi eq, %arg1, %c0_i32_3 : i32
    %5 = arith.andi %3, %4 : i1
    %6 = arith.extui %5 : i1 to i32
    %c0_i32_4 = arith.constant 0 : i32
    %7 = arith.cmpi ne, %6, %c0_i32_4 : i32
    scf.if %7 {
      %cst_11 = arith.constant 0.000000e+00 : f32
      %19 = vector.broadcast %cst_11 : f32 to vector<1x128xf32>
      %c0_12 = arith.constant 0 : index
      %c0_13 = arith.constant 0 : index
      %20 = vector.load %arg7[%c0_12, %c0_13] : memref<1x128xf32, #tpu.memory_space<vmem>>, vector<1x128xf32>
      tpu.vector_store %arg7[%c0_12, %c0_13], %19 {strides = array<i32>} : memref<1x128xf32, #tpu.memory_space<vmem>>, vector<1x128xf32>,
      %cst_14 = arith.constant 0.000000e+00 : f32
      %21 = vector.broadcast %cst_14 : f32 to vector<1x128xf32>
      %c0_15 = arith.constant 0 : index
      %c0_16 = arith.constant 0 : index
      %22 = vector.load %arg8[%c0_15, %c0_16] : memref<1x128xf32, #tpu.memory_space<vmem>>, vector<1x128xf32>
      tpu.vector_store %arg8[%c0_15, %c0_16], %21 {strides = array<i32>} : memref<1x128xf32, #tpu.memory_space<vmem>>, vector<1x128xf32>,
    } else {
    }
    %c0_i32_5 = arith.constant 0 : i32
    %8 = arith.cmpi eq, %arg0, %c0_i32_5 : i32
    %9 = arith.extui %8 : i1 to i32
    %c0_i32_6 = arith.constant 0 : i32
    %10 = arith.cmpi ne, %9, %c0_i32_6 : i32
    scf.if %10 {
      %c0_11 = arith.constant 0 : index
      %c0_12 = arith.constant 0 : index
      %19 = vector.load %arg7[%c0_11, %c0_12] : memref<1x128xf32, #tpu.memory_space<vmem>>, vector<1x128xf32>
      %cst_13 = arith.constant dense<0.000000e+00> : vector<128xf32>
      %20 = vector.multi_reduction <add>, %2, %cst_13 [0] : vector<104x128xf32> to vector<128xf32>
      %21 = vector.shape_cast %20 : vector<128xf32> to vector<1x128xf32>
      %22 = arith.addf %19, %21 : vector<1x128xf32>
      %c0_14 = arith.constant 0 : index
      %c0_15 = arith.constant 0 : index
      %23 = vector.load %arg7[%c0_14, %c0_15] : memref<1x128xf32, #tpu.memory_space<vmem>>, vector<1x128xf32>
      tpu.vector_store %arg7[%c0_14, %c0_15], %22 {strides = array<i32>} : memref<1x128xf32, #tpu.memory_space<vmem>>, vector<1x128xf32>,
      %c0_16 = arith.constant 0 : index
      %c0_17 = arith.constant 0 : index
      %24 = vector.load %arg8[%c0_16, %c0_17] : memref<1x128xf32, #tpu.memory_space<vmem>>, vector<1x128xf32>
      %25 = arith.mulf %2, %2 : vector<104x128xf32>
      %cst_18 = arith.constant dense<0.000000e+00> : vector<128xf32>
      %26 = vector.multi_reduction <add>, %25, %cst_18 [0] : vector<104x128xf32> to vector<128xf32>
      %27 = vector.shape_cast %26 : vector<128xf32> to vector<1x128xf32>
      %28 = arith.addf %24, %27 : vector<1x128xf32>
      %c0_19 = arith.constant 0 : index
      %c0_20 = arith.constant 0 : index
      %29 = vector.load %arg8[%c0_19, %c0_20] : memref<1x128xf32, #tpu.memory_space<vmem>>, vector<1x128xf32>
      tpu.vector_store %arg8[%c0_19, %c0_20], %28 {strides = array<i32>} : memref<1x128xf32, #tpu.memory_space<vmem>>, vector<1x128xf32>,
    } else {
    }
    %c1_i32 = arith.constant 1 : i32
    %11 = arith.cmpi eq, %arg0, %c1_i32 : i32
    %c0_i32_7 = arith.constant 0 : i32
    %12 = arith.cmpi eq, %arg1, %c0_i32_7 : i32
    %13 = arith.andi %11, %12 : i1
    %14 = arith.extui %13 : i1 to i32
    %c0_i32_8 = arith.constant 0 : i32
    %15 = arith.cmpi ne, %14, %c0_i32_8 : i32
    scf.if %15 {
      %c0_11 = arith.constant 0 : index
      %c0_12 = arith.constant 0 : index
      %19 = vector.load %arg7[%c0_11, %c0_12] : memref<1x128xf32, #tpu.memory_space<vmem>>, vector<1x128xf32>
      %cst_13 = arith.constant 0.0102040814 : f32
      %20 = vector.broadcast %cst_13 : f32 to vector<1x128xf32>
      %21 = arith.mulf %19, %20 : vector<1x128xf32>
      %c0_14 = arith.constant 0 : index
      %c0_15 = arith.constant 0 : index
      %22 = vector.load %arg8[%c0_14, %c0_15] : memref<1x128xf32, #tpu.memory_space<vmem>>, vector<1x128xf32>
      %cst_16 = arith.constant 0.0102040814 : f32
      %23 = vector.broadcast %cst_16 : f32 to vector<1x128xf32>
      %24 = arith.mulf %22, %23 : vector<1x128xf32>
      %25 = arith.mulf %21, %21 : vector<1x128xf32>
      %26 = arith.subf %24, %25 : vector<1x128xf32>
      %cst_17 = arith.constant 0.000000e+00 : f32
      %27 = vector.broadcast %cst_17 : f32 to vector<1x128xf32>
      %28 = arith.maximumf %26, %27 : vector<1x128xf32>
      %cst_18 = arith.constant 9.99999974E-6 : f32
      %29 = vector.broadcast %cst_18 : f32 to vector<1x128xf32>
      %30 = arith.addf %28, %29 : vector<1x128xf32>
      %31 = math.rsqrt %30 : vector<1x128xf32>
      %c0_19 = arith.constant 0 : index
      %c0_20 = arith.constant 0 : index
      %32 = vector.load %arg4[%c0_19, %c0_20] : memref<1x128xf32, #tpu.memory_space<vmem>>, vector<1x128xf32>
      %33 = arith.mulf %32, %31 : vector<1x128xf32>
      %c0_21 = arith.constant 0 : index
      %c0_22 = arith.constant 0 : index
      %34 = vector.load %arg9[%c0_21, %c0_22] : memref<1x128xf32, #tpu.memory_space<vmem>>, vector<1x128xf32>
      tpu.vector_store %arg9[%c0_21, %c0_22], %33 {strides = array<i32>} : memref<1x128xf32, #tpu.memory_space<vmem>>, vector<1x128xf32>,
      %c0_23 = arith.constant 0 : index
      %c0_24 = arith.constant 0 : index
      %35 = vector.load %arg5[%c0_23, %c0_24] : memref<1x128xf32, #tpu.memory_space<vmem>>, vector<1x128xf32>
      %36 = arith.mulf %21, %33 : vector<1x128xf32>
      %37 = arith.subf %35, %36 : vector<1x128xf32>
      %c0_25 = arith.constant 0 : index
      %c0_26 = arith.constant 0 : index
      %38 = vector.load %arg10[%c0_25, %c0_26] : memref<1x128xf32, #tpu.memory_space<vmem>>, vector<1x128xf32>
      tpu.vector_store %arg10[%c0_25, %c0_26], %37 {strides = array<i32>} : memref<1x128xf32, #tpu.memory_space<vmem>>, vector<1x128xf32>,
    } else {
    }
    %c1_i32_9 = arith.constant 1 : i32
    %16 = arith.cmpi eq, %arg0, %c1_i32_9 : i32
    %17 = arith.extui %16 : i1 to i32
    %c0_i32_10 = arith.constant 0 : i32
    %18 = arith.cmpi ne, %17, %c0_i32_10 : i32
    scf.if %18 {
      %c0_11 = arith.constant 0 : index
      %c0_12 = arith.constant 0 : index
      %19 = vector.load %arg9[%c0_11, %c0_12] : memref<1x128xf32, #tpu.memory_space<vmem>>, vector<1x128xf32>
      %20 = vector.broadcast %19 : vector<1x128xf32> to vector<104x128xf32>
      %21 = arith.mulf %2, %20 : vector<104x128xf32>
      %c0_13 = arith.constant 0 : index
      %c0_14 = arith.constant 0 : index
      %22 = vector.load %arg10[%c0_13, %c0_14] : memref<1x128xf32, #tpu.memory_space<vmem>>, vector<1x128xf32>
      %23 = vector.broadcast %22 : vector<1x128xf32> to vector<104x128xf32>
      %24 = arith.addf %21, %23 : vector<104x128xf32>
      %cst_15 = arith.constant 0.000000e+00 : f32
      %25 = vector.broadcast %cst_15 : f32 to vector<104x128xf32>
      %26 = arith.cmpf oge, %24, %25 : vector<104x128xf32>
      %cst_16 = arith.constant 0.00999999977 : f32
      %27 = vector.broadcast %cst_16 : f32 to vector<104x128xf32>
      %28 = arith.mulf %27, %24 : vector<104x128xf32>
      %29 = arith.select %26, %24, %28 : vector<104x128xi1>, vector<104x128xf32>
      %c0_17 = arith.constant 0 : index
      %c0_18 = arith.constant 0 : index
      %30 = vector.load %arg6[%c0_17, %c0_18] : memref<104x128xf32, #tpu.memory_space<vmem>>, vector<104x128xf32>
      tpu.vector_store %arg6[%c0_17, %c0_18], %29 {strides = array<i32>} : memref<104x128xf32, #tpu.memory_space<vmem>>, vector<104x128xf32>,
    } else {
    }
    return
  }
  func.func @transform_0(%arg0: i32, %arg1: i32) -> (i32, i32) {
    %c0_i32 = arith.constant 0 : i32
    %c0_i32_0 = arith.constant 0 : i32
    return %arg1, %c0_i32 : i32, i32
  }
  func.func @transform_1(%arg0: i32, %arg1: i32) -> (i32, i32) {
    %c0_i32 = arith.constant 0 : i32
    %c0_i32_0 = arith.constant 0 : i32
    %c0_i32_1 = arith.constant 0 : i32
    return %c0_i32, %c0_i32_0 : i32, i32
  }
  func.func @transform_2(%arg0: i32, %arg1: i32) -> (i32, i32) {
    %c0_i32 = arith.constant 0 : i32
    %c0_i32_0 = arith.constant 0 : i32
    %c0_i32_1 = arith.constant 0 : i32
    return %c0_i32, %c0_i32_0 : i32, i32
  }
  func.func @transform_3(%arg0: i32, %arg1: i32) -> (i32, i32) {
    %c0_i32 = arith.constant 0 : i32
    %c0_i32_0 = arith.constant 0 : i32
    %c0_i32_1 = arith.constant 0 : i32
    return %c0_i32, %c0_i32_0 : i32, i32
  }
  func.func @transform_4(%arg0: i32, %arg1: i32) -> (i32, i32) {
    %0 = arith.muli %arg1, %arg0 : i32
    %c0_i32 = arith.constant 0 : i32
    %c0_i32_0 = arith.constant 0 : i32
    return %0, %c0_i32 : i32, i32
  }
}

</mosaic_0001>

<llo_original>
// kernel: tpu_custom_call.1
$region0: #{tpu_custom_call.1}
  #allocation0 [shape = 'u32[]', space=smem, size = 0x4, offset = 0x4, fixed_abs, tag = 'smem constant byte address 0x4 - core index']
  #allocation1 [shape = 'u32[144,128]{1,0:T(1,128)}', space=vmem, size = 0x12000, scoped, tag = 'internal scratch']
  #allocation2 [shape = 'f32[1,128]{1,0:T(1,128)}', space=vmem, size = 0x200, scoped, tag = 'scratch operand']
  #allocation3 [shape = 'f32[1,128]{1,0:T(1,128)}', space=vmem, size = 0x200, scoped, tag = 'scratch operand']
  #allocation4 [shape = 'f32[1,128]{1,0:T(1,128)}', space=vmem, size = 0x200, scoped, tag = 'scratch operand']
  #allocation5 [shape = 'f32[1,128]{1,0:T(1,128)}', space=vmem, size = 0x200, scoped, tag = 'scratch operand']
  %s0 = inlined_call_operand.hbm [shape: bf16[104,128], index: 0, kind: input, shape index: {}]
  %s1 = inlined_call_operand.hbm [shape: bf16[128,128], index: 1, kind: input, shape index: {}]
  %s2 = inlined_call_operand.vmem [shape: f32[1,128], index: 2, kind: input, shape index: {}]
  %s3 = inlined_call_operand.vmem [shape: f32[1,128], index: 3, kind: input, shape index: {}]
  %s4 = inlined_call_operand.hbm [shape: f32[104,128], index: 4, kind: output, shape index: {}]
  %s5 = sld [smem:[#allocation0]]
  $region73: #{tpu_custom_call.1} parent=0
    _
  %s7 = ssub.s32 1, %s5
  %s8 = scalar_select 0, %s7, %s5
  $region1: #{tpu_custom_call.1} parent=0
    #allocation6 [shape = 'u8[26624]{0}', space=vmem, size = 0x6800, scoped, tag = 'input window, operand 0, single buffered']
    #allocation7 [shape = 's32[2]{0}', space=sflag, size = 0x8, scoped, tag = 'scoped memory for tpu_custom_call.1']
    #allocation8 [shape = 's32[2]{0}', space=sflag, size = 0x8, scoped, tag = 'scoped memory for tpu_custom_call.1']
    #allocation9 [shape = 'u8[32768]{0}', space=vmem, size = 0x8000, scoped, tag = 'input window, operand 1, single buffered']
    #allocation10 [shape = 's32[1]{0}', space=sflag, size = 0x4, scoped, tag = 'scoped memory for tpu_custom_call.1']
    #allocation11 [shape = 'u8[106496]{0}', space=vmem, size = 0x1a000, scoped, tag = 'output window, operand 0']
    %9 = vsyncpa [#allocation7], 0
    %10 = vsyncpa [#allocation10], 0
    %11 = vsyncpa [#allocation8], 0
    %s12 = scalar_lea.sflag [#allocation8], 1
    %13 = vsyncpa %s12, 0
    loop: start=0, step=1, limit=4
    $region2: #{tpu_custom_call.1} parent=1 // loop_pre_header
      _
    $region3: #{tpu_custom_call.1} parent=1 // loop_header
      %s15 = sphi 0, %s19
      %p16 = scmp.ge.s32.totalorder %s15, 4
      %s22 = sphi 0, %s34
      %s23 = sphi 0, %s30
      %s24 = sphi 0, %s22
      %s25 = sphi 0, %s23
      %s26 = sphi 0, %s24
      %s27 = sphi 0, %s25
      %s37 = sphi 0, %s39
      %s40 = sphi 0, %s37
      %s41 = sphi 0, %s40
      %s57 = sphi 0, %s41
      %s61 = sphi 0, %s61
      %s63 = sphi 0, %s61
      %s64 = sphi 0, %s63
      %s78 = sphi 0, %s64
      %s82 = sphi 0, %s82
      %s84 = sphi 0, %s82
      %s85 = sphi 0, %s84
      %s99 = sphi 0, %s85
      %s103 = sphi 0, %s103
      %s105 = sphi 0, %s103
      %s106 = sphi 0, %s105
      %s120 = sphi 0, %s106
      %s128 = sphi 0, %s130
      %s131 = sphi 0, %s128
      %s132 = sphi 0, %s131
      %s148 = sphi 0, %s132
    $region4: #{tpu_custom_call.1} parent=1 // loop_header_branch
      %18 = sbr.rel (%p16) target = $region8
    $region5: #{tpu_custom_call.1} parent=1 // loop_body
      %s20 = ssub.s32 %s15, 1
      %s21 = ssub.s32 %s15, 2
      %s28 = sadd.s32 1, %s23
      %p29 = scmp.ge.s32.totalorder %s28, 1
      %s30 = scalar_select %p29, 0, %s28
      %s31 = sadd.s32 1, %s22
      %s32 = scalar_select %p29, %s31, %s22
      %p33 = scmp.ge.s32.totalorder %s32, 2
      %s34 = scalar_select %p33, 0, %s32
      %s35 = ssub.s32 %s23, %s30
      %p36 = scmp.eq.s32.totalorder %s35, 0
      %s38 = sadd.s32 %s37, 1
      %s39 = scalar_select %p36, %s37, %s38
      %p42 = pneg %p36
      %p43 = scmp.eq.s32.totalorder %s15, 1
      %p44 = por %p42, %p43
      %p45 = scmp.ne.s32.totalorder %s37, %s40
      %p46 = scmp.eq.s32.totalorder %s15, 0
      %p47 = por %p45, %p46
      %p48 = scmp.ne.s32.totalorder %s37, %s40
      %p49 = scmp.eq.s32.totalorder %s20, 1
      %p50 = por %p48, %p49
      %p51 = scmp.ne.s32.totalorder %s40, %s41
      %p52 = scmp.eq.s32.totalorder %s20, 0
      %p53 = por %p51, %p52
      %p54 = scmp.ne.s32.totalorder %s40, %s41
      %p55 = scmp.eq.s32.totalorder %s21, 1
      %p56 = por %p54, %p55
      %p58 = scmp.ne.s32.totalorder %s41, %s57
      %p59 = scmp.eq.s32.totalorder %s21, 0
      %p60 = por %p58, %p59
      %s62 = sadd.s32 %s61, 1
      %p65 = scmp.eq.s32.totalorder %s15, 1
      %p66 = scmp.ne.s32.totalorder %s61, %s63
      %p67 = scmp.eq.s32.totalorder %s15, 0
      %p68 = por %p66, %p67
      %p69 = scmp.ne.s32.totalorder %s61, %s63
      %p70 = scmp.eq.s32.totalorder %s20, 1
      %p71 = por %p69, %p70
      %p72 = scmp.ne.s32.totalorder %s63, %s64
      %p73 = scmp.eq.s32.totalorder %s20, 0
      %p74 = por %p72, %p73
      %p75 = scmp.ne.s32.totalorder %s63, %s64
      %p76 = scmp.eq.s32.totalorder %s21, 1
      %p77 = por %p75, %p76
      %p79 = scmp.ne.s32.totalorder %s64, %s78
      %p80 = scmp.eq.s32.totalorder %s21, 0
      %p81 = por %p79, %p80
      %s83 = sadd.s32 %s82, 1
      %p86 = scmp.eq.s32.totalorder %s15, 1
      %p87 = scmp.ne.s32.totalorder %s82, %s84
      %p88 = scmp.eq.s32.totalorder %s15, 0
      %p89 = por %p87, %p88
      %p90 = scmp.ne.s32.totalorder %s82, %s84
      %p91 = scmp.eq.s32.totalorder %s20, 1
      %p92 = por %p90, %p91
      %p93 = scmp.ne.s32.totalorder %s84, %s85
      %p94 = scmp.eq.s32.totalorder %s20, 0
      %p95 = por %p93, %p94
      %p96 = scmp.ne.s32.totalorder %s84, %s85
      %p97 = scmp.eq.s32.totalorder %s21, 1
      %p98 = por %p96, %p97
      %p100 = scmp.ne.s32.totalorder %s85, %s99
      %p101 = scmp.eq.s32.totalorder %s21, 0
      %p102 = por %p100, %p101
      %s104 = sadd.s32 %s103, 1
      %p107 = scmp.eq.s32.totalorder %s15, 1
      %p108 = scmp.ne.s32.totalorder %s103, %s105
      %p109 = scmp.eq.s32.totalorder %s15, 0
      %p110 = por %p108, %p109
      %p111 = scmp.ne.s32.totalorder %s103, %s105
      %p112 = scmp.eq.s32.totalorder %s20, 1
      %p113 = por %p111, %p112
      %p114 = scmp.ne.s32.totalorder %s105, %s106
      %p115 = scmp.eq.s32.totalorder %s20, 0
      %p116 = por %p114, %p115
      %p117 = scmp.ne.s32.totalorder %s105, %s106
      %p118 = scmp.eq.s32.totalorder %s21, 1
      %p119 = por %p117, %p118
      %p121 = scmp.ne.s32.totalorder %s106, %s120
      %p122 = scmp.eq.s32.totalorder %s21, 0
      %p123 = por %p121, %p122
      %s124 = smul.u32 %s23, %s22
      %s125 = smul.u32 %s30, %s34
      %s126 = ssub.s32 %s124, %s125
      %p127 = scmp.eq.s32.totalorder %s126, 0
      %s129 = sadd.s32 %s128, 1
      %s130 = scalar_select %p127, %s128, %s129
      %p133 = pneg %p127
      %p134 = scmp.eq.s32.totalorder %s15, 1
      %p135 = por %p133, %p134
      %p136 = scmp.ne.s32.totalorder %s128, %s131
      %p137 = scmp.eq.s32.totalorder %s15, 0
      %p138 = por %p136, %p137
      %p139 = scmp.ne.s32.totalorder %s128, %s131
      %p140 = scmp.eq.s32.totalorder %s20, 1
      %p141 = por %p139, %p140
      %p142 = scmp.ne.s32.totalorder %s131, %s132
      %p143 = scmp.eq.s32.totalorder %s20, 0
      %p144 = por %p142, %p143
      %p145 = scmp.ne.s32.totalorder %s131, %s132
      %p146 = scmp.eq.s32.totalorder %s21, 1
      %p147 = por %p145, %p146
      %p149 = scmp.ne.s32.totalorder %s132, %s148
      %p150 = scmp.eq.s32.totalorder %s21, 0
      %p151 = por %p149, %p150
      %p152 = scmp.le.s32.totalorder 1, %s15
      %p153 = scmp.lt.s32.totalorder %s15, 3
      %p154 = pnand %p152, %p153
      %p155 = pneg %p154
      // Predicated region
      $region9: #{tpu_custom_call.1} parent=5 // pred_check
        _
      $region10: #{tpu_custom_call.1} parent=5 // pred_check_branch
        %157 = sbr.rel (%p154) target = $region12
      $region11: #{tpu_custom_call.1} parent=5 // pred_region
        %s158 = ssub.s32 %s15, 1
        // Predicated region
        $region13: #{tpu_custom_call.1} parent=11 // pred_check
          %p159 = pneg %p53
        $region14: #{tpu_custom_call.1} parent=11 // pred_check_branch
          %161 = sbr.rel (%p159) target = $region16
        $region15: #{tpu_custom_call.1} parent=11 // pred_region
          %s162 = smul.u32 13, %s25
          %s164 = ssub.s32 832, 832
          %165 = vsyncadd [#allocation7], %s164
          %s166 = smul.addr %s162, 64
          %s167 = scalar_lea.hbm %s0, %s166
          %s168 = sshll.u32 [#allocation6], 4
          %s169 = int_to_ptr.vmem [resolvable:$true] %s168
          %174 = dma.hbm_to_vmem [thread:$0]  %s167, 832, %s169, [#allocation7], 64, 64, 4
        $region16: #{tpu_custom_call.1} parent=11 // pred_fallthru
          _
        // Predicated region
        $region17: #{tpu_custom_call.1} parent=11 // pred_check
          %p175 = pneg %p74
        $region18: #{tpu_custom_call.1} parent=11 // pred_check_branch
          %177 = sbr.rel (%p175) target = $region20
        $region19: #{tpu_custom_call.1} parent=11 // pred_region
          %s179 = ssub.s32 1024, 1024
          %180 = vsyncadd [#allocation10], %s179
          %s181 = sshll.u32 [#allocation9], 4
          %s182 = int_to_ptr.vmem [resolvable:$true] %s181
          %187 = dma.hbm_to_vmem [thread:$0]  %s1, 1024, %s182, [#allocation10], 64, 64, 4
        $region20: #{tpu_custom_call.1} parent=11 // pred_fallthru
          _
        // Predicated region
        $region21: #{tpu_custom_call.1} parent=11 // pred_check
          %p188 = pneg %p95
        $region22: #{tpu_custom_call.1} parent=11 // pred_check_branch
          %190 = sbr.rel (%p188) target = $region24
        $region23: #{tpu_custom_call.1} parent=11 // pred_region
          _
        $region24: #{tpu_custom_call.1} parent=11 // pred_fallthru
          _
        // Predicated region
        $region25: #{tpu_custom_call.1} parent=11 // pred_check
          %p191 = pneg %p116
        $region26: #{tpu_custom_call.1} parent=11 // pred_check_branch
          %193 = sbr.rel (%p191) target = $region28
        $region27: #{tpu_custom_call.1} parent=11 // pred_region
          _
        $region28: #{tpu_custom_call.1} parent=11 // pred_fallthru
          _
      $region12: #{tpu_custom_call.1} parent=5 // pred_fallthru
        _
      %p194 = scmp.lt.s32.totalorder %s15, 2
      // Predicated region
      $region29: #{tpu_custom_call.1} parent=5 // pred_check
        %p195 = pneg %p194
      $region30: #{tpu_custom_call.1} parent=5 // pred_check_branch
        %197 = sbr.rel (%p195) target = $region32
      $region31: #{tpu_custom_call.1} parent=5 // pred_region
        _
      $region32: #{tpu_custom_call.1} parent=5 // pred_fallthru
        _
      %p198 = scmp.le.s32.totalorder 1, %s15
      %p199 = scmp.lt.s32.totalorder %s15, 3
      %p200 = pnand %p198, %p199
      %p201 = pneg %p200
      // Predicated region
      $region33: #{tpu_custom_call.1} parent=5 // pred_check
        _
      $region34: #{tpu_custom_call.1} parent=5 // pred_check_branch
        %203 = sbr.rel (%p200) target = $region36
      $region35: #{tpu_custom_call.1} parent=5 // pred_region
        %s204 = ssub.s32 %s15, 1
        // Predicated region
        $region37: #{tpu_custom_call.1} parent=35 // pred_check
          %p205 = pneg %p53
        $region38: #{tpu_custom_call.1} parent=35 // pred_check_branch
          %207 = sbr.rel (%p205) target = $region40
        $region39: #{tpu_custom_call.1} parent=35 // pred_region
          %208 = dma.done [#allocation7], 832
        $region40: #{tpu_custom_call.1} parent=35 // pred_fallthru
          _
        // Predicated region
        $region41: #{tpu_custom_call.1} parent=35 // pred_check
          %p209 = pneg %p74
        $region42: #{tpu_custom_call.1} parent=35 // pred_check_branch
          %211 = sbr.rel (%p209) target = $region44
        $region43: #{tpu_custom_call.1} parent=35 // pred_region
          %212 = dma.done [#allocation10], 1024
        $region44: #{tpu_custom_call.1} parent=35 // pred_fallthru
          _
        %p213 = pneg %p53
        %p214 = pneg %p50
        %p215 = pneg %p74
        %p216 = pneg %p71
        %p217 = pneg %p95
        %p218 = pneg %p92
        %p219 = pneg %p116
        %p220 = pneg %p113
        %p221 = pneg %p144
        %p222 = pneg %p141
        %s223 = sand.u32 %s131, 1
        %s224 = scalar_lea.sflag [#allocation8], %s223
        %s225 = sand.u32 %s131, 1
        %s226 = smul.addr %s225, 104
        %s227 = scalar_lea.vmem [#allocation11], %s226
        %s228 = smul.u32 13, %s25
        %s229 = smul.u32 %s25, %s24
        %s230 = smul.u32 13, %s229
        %v232 = vld [vmem:[#allocation6] sm:$0xf]
        %v233 = vld [vmem:[#allocation6 + $0x4] sm:$0xf]
        %v234 = vld [vmem:[#allocation6 + $0x8] sm:$0xf]
        %v235 = vld [vmem:[#allocation6 + $0xc] sm:$0xf]
        %v236 = vld [vmem:[#allocation6 + $0x10] sm:$0xf]
        %v237 = vld [vmem:[#allocation6 + $0x14] sm:$0xf]
        %v238 = vld [vmem:[#allocation6 + $0x18] sm:$0xf]
        %v239 = vld [vmem:[#allocation6 + $0x1c] sm:$0xf]
        %v240 = vld [vmem:[#allocation6 + $0x20] sm:$0xf]
        %v241 = vld [vmem:[#allocation6 + $0x24] sm:$0xf]
        %v242 = vld [vmem:[#allocation6 + $0x28] sm:$0xf]
        %v243 = vld [vmem:[#allocation6 + $0x2c] sm:$0xf]
        %v244 = vld [vmem:[#allocation6 + $0x30] sm:$0xf]
        %v245 = vld [vmem:[#allocation9] sm:$0xf]
        %v246 = vld [vmem:[#allocation9 + $0x4] sm:$0xf]
        %v247 = vld [vmem:[#allocation9 + $0x8] sm:$0xf]
        %v248 = vld [vmem:[#allocation9 + $0xc] sm:$0xf]
        %v249 = vld [vmem:[#allocation9 + $0x10] sm:$0xf]
        %v250 = vld [vmem:[#allocation9 + $0x14] sm:$0xf]
        %v251 = vld [vmem:[#allocation9 + $0x18] sm:$0xf]
        %v252 = vld [vmem:[#allocation9 + $0x1c] sm:$0xf]
        %v253 = vld [vmem:[#allocation9 + $0x20] sm:$0xf]
        %v254 = vld [vmem:[#allocation9 + $0x24] sm:$0xf]
        %v255 = vld [vmem:[#allocation9 + $0x28] sm:$0xf]
        %v256 = vld [vmem:[#allocation9 + $0x2c] sm:$0xf]
        %v257 = vld [vmem:[#allocation9 + $0x30] sm:$0xf]
        %v258 = vld [vmem:[#allocation9 + $0x34] sm:$0xf]
        %v259 = vld [vmem:[#allocation9 + $0x38] sm:$0xf]
        %v260 = vld [vmem:[#allocation9 + $0x3c] sm:$0xf]
        %v274 = vunpack.c.l.b16 %v232
        %v275 = vunpack.c.l.b16 %v233
        %v276 = vunpack.c.l.b16 %v234
        %v277 = vunpack.c.l.b16 %v235
        %v278 = vunpack.c.l.b16 %v236
        %v279 = vunpack.c.l.b16 %v237
        %v280 = vunpack.c.l.b16 %v238
        %v281 = vunpack.c.l.b16 %v239
        %v282 = vunpack.c.l.b16 %v240
        %v283 = vunpack.c.l.b16 %v241
        %v284 = vunpack.c.l.b16 %v242
        %v285 = vunpack.c.l.b16 %v243
        %v286 = vunpack.c.l.b16 %v244
        %v287 = vpack.c.b16 %v275, %v274
        %v288 = vpack.c.b16 %v277, %v276
        %v289 = vpack.c.b16 %v279, %v278
        %v290 = vpack.c.b16 %v281, %v280
        %v291 = vpack.c.b16 %v283, %v282
        %v292 = vpack.c.b16 %v285, %v284
        %v293 = vpack.c.b16 %v286, %v286
        %v317 = vunpack.c.l.b16 %v245
        %v318 = vunpack.c.l.b16 %v246
        %v319 = vunpack.c.l.b16 %v247
        %v320 = vunpack.c.l.b16 %v248
        %v321 = vunpack.c.l.b16 %v249
        %v322 = vunpack.c.l.b16 %v250
        %v323 = vunpack.c.l.b16 %v251
        %v324 = vunpack.c.l.b16 %v252
        %v325 = vunpack.c.l.b16 %v253
        %v326 = vunpack.c.l.b16 %v254
        %v327 = vunpack.c.l.b16 %v255
        %v328 = vunpack.c.l.b16 %v256
        %v329 = vunpack.c.l.b16 %v257
        %v330 = vunpack.c.l.b16 %v258
        %v331 = vunpack.c.l.b16 %v259
        %v332 = vunpack.c.l.b16 %v260
        %v333 = vpack.c.b16 %v318, %v317
        %v334 = vpack.c.b16 %v320, %v319
        %v335 = vpack.c.b16 %v322, %v321
        %v336 = vpack.c.b16 %v324, %v323
        %v337 = vpack.c.b16 %v326, %v325
        %v338 = vpack.c.b16 %v328, %v327
        %v339 = vpack.c.b16 %v330, %v329
        %v340 = vpack.c.b16 %v332, %v331
        %349 = vmatprep.subr.bf16.mxu0 0
        %350 = vmatpush1.bf16.msra.mxu0 %v333
        %351 = vmatprep.subr.bf16.mxu0 0
        %352 = vmatpush1.bf16.msra.mxu0 %v334
        %353 = vmatprep.subr.bf16.mxu0 0
        %354 = vmatpush1.bf16.msra.mxu0 %v335
        %355 = vmatprep.subr.bf16.mxu0 0
        %356 = vmatpush1.bf16.msra.mxu0 %v336
        %357 = vmatprep.subr.bf16.mxu0 0
        %358 = vmatpush1.bf16.msra.mxu0 %v337
        %359 = vmatprep.subr.bf16.mxu0 0
        %360 = vmatpush1.bf16.msra.mxu0 %v338
        %361 = vmatprep.subr.bf16.mxu0 0
        %362 = vmatpush1.bf16.msra.mxu0 %v339
        %363 = vmatprep.subr.bf16.mxu0 0
        %364 = vmatpush1.bf16.msra.mxu0 %v340
        %365 = vmatprep.subr.bf16.mxu0 0
        %366 = vmatpush1.bf16.msra.mxu0 0
        %367 = vmatprep.subr.bf16.mxu0 0
        %368 = vmatpush1.bf16.msra.mxu0 0
        %369 = vmatprep.subr.bf16.mxu0 0
        %370 = vmatpush1.bf16.msra.mxu0 0
        %371 = vmatprep.subr.bf16.mxu0 0
        %372 = vmatpush1.bf16.msra.mxu0 0
        %373 = vmatprep.subr.bf16.mxu0 0
        %374 = vmatpush1.bf16.msra.mxu0 0
        %375 = vmatprep.subr.bf16.mxu0 0
        %376 = vmatpush1.bf16.msra.mxu0 0
        %377 = vmatprep.subr.bf16.mxu0 0
        %378 = vmatpush1.bf16.msra.mxu0 0
        %379 = vmatprep.subr.bf16.mxu0 0
        %380 = vmatpush1.bf16.msra.mxu0 0
        %381 = vmatprep.mubr.bf16.mxu0 0
        %382 = vmatmul.mubr.bf16.gmra.mrb[0].mxu0 %v287
        %v383 = vpop.f32.mrb[0].mxu0
        %v384 = vadd.f32 0.0, %v383
        %v385 = vpop.f32.mrb[0].mxu0
        %v386 = vpop.f32.mrb[0].mxu0
        %v387 = vadd.f32 0.0, %v386
        %v388 = vpop.f32.mrb[0].mxu0
        %389 = vmatprep.mubr.bf16.mxu0 0
        %390 = vmatmul.mubr.bf16.gmra.mrb[0].mxu0 %v288
        %v391 = vpop.f32.mrb[0].mxu0
        %v392 = vadd.f32 0.0, %v391
        %v393 = vpop.f32.mrb[0].mxu0
        %v394 = vpop.f32.mrb[0].mxu0
        %v395 = vadd.f32 0.0, %v394
        %v396 = vpop.f32.mrb[0].mxu0
        %397 = vmatprep.mubr.bf16.mxu0 0
        %398 = vmatmul.mubr.bf16.gmra.mrb[0].mxu0 %v289
        %v399 = vpop.f32.mrb[0].mxu0
        %v400 = vadd.f32 0.0, %v399
        %v401 = vpop.f32.mrb[0].mxu0
        %v402 = vpop.f32.mrb[0].mxu0
        %v403 = vadd.f32 0.0, %v402
        %v404 = vpop.f32.mrb[0].mxu0
        %405 = vmatprep.mubr.bf16.mxu0 0
        %406 = vmatmul.mubr.bf16.gmra.mrb[0].mxu0 %v290
        %v407 = vpop.f32.mrb[0].mxu0
        %v408 = vadd.f32 0.0, %v407
        %v409 = vpop.f32.mrb[0].mxu0
        %v410 = vpop.f32.mrb[0].mxu0
        %v411 = vadd.f32 0.0, %v410
        %v412 = vpop.f32.mrb[0].mxu0
        %413 = vmatprep.mubr.bf16.mxu0 0
        %414 = vmatmul.mubr.bf16.gmra.mrb[0].mxu0 %v291
        %v415 = vpop.f32.mrb[0].mxu0
        %v416 = vadd.f32 0.0, %v415
        %v417 = vpop.f32.mrb[0].mxu0
        %v418 = vpop.f32.mrb[0].mxu0
        %v419 = vadd.f32 0.0, %v418
        %v420 = vpop.f32.mrb[0].mxu0
        %421 = vmatprep.mubr.bf16.mxu0 0
        %422 = vmatmul.mubr.bf16.gmra.mrb[0].mxu0 %v292
        %v423 = vpop.f32.mrb[0].mxu0
        %v424 = vadd.f32 0.0, %v423
        %v425 = vpop.f32.mrb[0].mxu0
        %v426 = vpop.f32.mrb[0].mxu0
        %v427 = vadd.f32 0.0, %v426
        %v428 = vpop.f32.mrb[0].mxu0
        %429 = vmatprep.mubr.bf16.mxu0 0
        %430 = vmatmul.mubr.bf16.gmra.mrb[0].mxu0 %v293
        %v431 = vpop.f32.mrb[0].mxu0
        %v432 = vadd.f32 0.0, %v431
        %v433 = vpop.f32.mrb[0].mxu0
        %v434 = vpop.f32.mrb[0].mxu0
        %v435 = vpop.f32.mrb[0].mxu0
        %436 = vdwg.mxu0
        %p437 = scmp.eq.s32.totalorder %s24, 0
        %p438 = scmp.eq.s32.totalorder %s25, 0
        %p439 = pnand %p437, %p438
        %p440 = pneg %p439
        // Predicated region
        $region45: #{tpu_custom_call.1} parent=35 // pred_check
          _
        $region46: #{tpu_custom_call.1} parent=35 // pred_check_branch
          %442 = sbr.rel (%p439) target = $region48
        $region47: #{tpu_custom_call.1} parent=35 // pred_region
          %443 = vst [vmem:[#allocation2] sm:$0x1] 0.0
          %444 = vst [vmem:[#allocation3] sm:$0x1] 0.0
        $region48: #{tpu_custom_call.1} parent=35 // pred_fallthru
          _
        // Predicated region
        $region49: #{tpu_custom_call.1} parent=35 // pred_check
          %p445 = pneg %p437
        $region50: #{tpu_custom_call.1} parent=35 // pred_check_branch
          %447 = sbr.rel (%p445) target = $region52
        $region51: #{tpu_custom_call.1} parent=35 // pred_region
          %v448 = vld [vmem:[#allocation2] sm:$0x1]
          %v449 = vadd.f32 %v384, %v387
          %v450 = vadd.f32 %v449, %v392
          %v451 = vadd.f32 %v450, %v395
          %v452 = vadd.f32 %v451, %v400
          %v453 = vadd.f32 %v452, %v403
          %v454 = vadd.f32 %v453, %v408
          %v455 = vadd.f32 %v454, %v411
          %v456 = vadd.f32 %v455, %v416
          %v457 = vadd.f32 %v456, %v419
          %v458 = vadd.f32 %v457, %v424
          %v459 = vadd.f32 %v458, %v427
          %v460 = vadd.f32 %v459, %v432
          %v461 = vrot.slane %v460, 4
          %v462 = vadd.f32 %v460, %v461
          %v463 = vrot.slane %v462, 2
          %v464 = vadd.f32 %v462, %v463
          %v465 = vrot.slane %v464, 1
          %v466 = vadd.f32 %v464, %v465
          %v467 = vadd.f32 %v448, %v466
          %468 = vst [vmem:[#allocation2] sm:$0x1] %v467
          %v469 = vld [vmem:[#allocation3] sm:$0x1]
          %v470 = vmul.f32 %v384, %v384
          %v471 = vmul.f32 %v387, %v387
          %v472 = vmul.f32 %v392, %v392
          %v473 = vmul.f32 %v395, %v395
          %v474 = vmul.f32 %v400, %v400
          %v475 = vmul.f32 %v403, %v403
          %v476 = vmul.f32 %v408, %v408
          %v477 = vmul.f32 %v411, %v411
          %v478 = vmul.f32 %v416, %v416
          %v479 = vmul.f32 %v419, %v419
          %v480 = vmul.f32 %v424, %v424
          %v481 = vmul.f32 %v427, %v427
          %v482 = vmul.f32 %v432, %v432
          %v483 = vadd.f32 %v470, %v471
          %v484 = vadd.f32 %v483, %v472
          %v485 = vadd.f32 %v484, %v473
          %v486 = vadd.f32 %v485, %v474
          %v487 = vadd.f32 %v486, %v475
          %v488 = vadd.f32 %v487, %v476
          %v489 = vadd.f32 %v488, %v477
          %v490 = vadd.f32 %v489, %v478
          %v491 = vadd.f32 %v490, %v479
          %v492 = vadd.f32 %v491, %v480
          %v493 = vadd.f32 %v492, %v481
          %v494 = vadd.f32 %v493, %v482
          %v495 = vrot.slane %v494, 4
          %v496 = vadd.f32 %v494, %v495
          %v497 = vrot.slane %v496, 2
          %v498 = vadd.f32 %v496, %v497
          %v499 = vrot.slane %v498, 1
          %v500 = vadd.f32 %v498, %v499
          %v501 = vadd.f32 %v469, %v500
          %502 = vst [vmem:[#allocation3] sm:$0x1] %v501
        $region52: #{tpu_custom_call.1} parent=35 // pred_fallthru
          _
        %p503 = scmp.eq.s32.totalorder %s24, 1
        %p504 = pnand %p503, %p438
        %p505 = pneg %p504
        // Predicated region
        $region53: #{tpu_custom_call.1} parent=35 // pred_check
          _
        $region54: #{tpu_custom_call.1} parent=35 // pred_check_branch
          %507 = sbr.rel (%p504) target = $region56
        $region55: #{tpu_custom_call.1} parent=35 // pred_region
          %v508 = vld [vmem:[#allocation2] sm:$0x1]
          %v509 = vmul.f32 %v508, 0.010204081
          %v510 = vld [vmem:[#allocation3] sm:$0x1]
          %v511 = vmul.f32 %v510, 0.010204081
          %v512 = vmul.f32 %v509, %v509
          %v513 = vsub.f32 %v511, %v512
          %v514 = vmax.f32 %v513, 0.0
          %v515 = vadd.f32 %v514, 1e-05
          %v516 = vrsqrt.pop %v515
          %v517 = vld [vmem:[%s2] sm:$0x1]
          %v518 = vmul.f32 %v517, %v516
          %519 = vst [vmem:[#allocation4] sm:$0x1] %v518
          %v520 = vld [vmem:[%s3] sm:$0x1]
          %v521 = vmul.f32 %v509, %v518
          %v522 = vsub.f32 %v520, %v521
          %523 = vst [vmem:[#allocation5] sm:$0x1] %v522
        $region56: #{tpu_custom_call.1} parent=35 // pred_fallthru
          _
        // Predicated region
        $region57: #{tpu_custom_call.1} parent=35 // pred_check
          %p524 = pneg %p503
        $region58: #{tpu_custom_call.1} parent=35 // pred_check_branch
          %526 = sbr.rel (%p524) target = $region60
        $region59: #{tpu_custom_call.1} parent=35 // pred_region
          %v527 = vld [vmem:[#allocation4] sm:$0x1]
          %v529 = vlaneseq
          %v530 = vshrl.u32 %v529, 7
          %v531 = vsub.s32 0, %v530
          %v532 = vrot.slane %v527, %v531
          %v534 = vmul.f32 %v384, %v532
          %v535 = vmul.f32 %v387, %v532
          %v536 = vmul.f32 %v392, %v532
          %v537 = vmul.f32 %v395, %v532
          %v538 = vmul.f32 %v400, %v532
          %v539 = vmul.f32 %v403, %v532
          %v540 = vmul.f32 %v408, %v532
          %v541 = vmul.f32 %v411, %v532
          %v542 = vmul.f32 %v416, %v532
          %v543 = vmul.f32 %v419, %v532
          %v544 = vmul.f32 %v424, %v532
          %v545 = vmul.f32 %v427, %v532
          %v546 = vmul.f32 %v432, %v532
          %v547 = vld [vmem:[#allocation5] sm:$0x1]
          %v549 = vlaneseq
          %v550 = vshrl.u32 %v549, 7
          %v551 = vsub.s32 0, %v550
          %v552 = vrot.slane %v547, %v551
          %v554 = vadd.f32 %v534, %v552
          %v555 = vadd.f32 %v535, %v552
          %v556 = vadd.f32 %v536, %v552
          %v557 = vadd.f32 %v537, %v552
          %v558 = vadd.f32 %v538, %v552
          %v559 = vadd.f32 %v539, %v552
          %v560 = vadd.f32 %v540, %v552
          %v561 = vadd.f32 %v541, %v552
          %v562 = vadd.f32 %v542, %v552
          %v563 = vadd.f32 %v543, %v552
          %v564 = vadd.f32 %v544, %v552
          %v565 = vadd.f32 %v545, %v552
          %v566 = vadd.f32 %v546, %v552
          %vm567 = vcmp.ge.f32.partialorder %v554, 0.0
          %vm568 = vcmp.ge.f32.partialorder %v555, 0.0
          %vm569 = vcmp.ge.f32.partialorder %v556, 0.0
          %vm570 = vcmp.ge.f32.partialorder %v557, 0.0
          %vm571 = vcmp.ge.f32.partialorder %v558, 0.0
          %vm572 = vcmp.ge.f32.partialorder %v559, 0.0
          %vm573 = vcmp.ge.f32.partialorder %v560, 0.0
          %vm574 = vcmp.ge.f32.partialorder %v561, 0.0
          %vm575 = vcmp.ge.f32.partialorder %v562, 0.0
          %vm576 = vcmp.ge.f32.partialorder %v563, 0.0
          %vm577 = vcmp.ge.f32.partialorder %v564, 0.0
          %vm578 = vcmp.ge.f32.partialorder %v565, 0.0
          %vm579 = vcmp.ge.f32.partialorder %v566, 0.0
          %v580 = vmul.f32 %v554, 0.01
          %v581 = vmul.f32 %v555, 0.01
          %v582 = vmul.f32 %v556, 0.01
          %v583 = vmul.f32 %v557, 0.01
          %v584 = vmul.f32 %v558, 0.01
          %v585 = vmul.f32 %v559, 0.01
          %v586 = vmul.f32 %v560, 0.01
          %v587 = vmul.f32 %v561, 0.01
          %v588 = vmul.f32 %v562, 0.01
          %v589 = vmul.f32 %v563, 0.01
          %v590 = vmul.f32 %v564, 0.01
          %v591 = vmul.f32 %v565, 0.01
          %v592 = vmul.f32 %v566, 0.01
          %v593 = vsel %vm567, %v554, %v580
          %v594 = vsel %vm568, %v555, %v581
          %v595 = vsel %vm569, %v556, %v582
          %v596 = vsel %vm570, %v557, %v583
          %v597 = vsel %vm571, %v558, %v584
          %v598 = vsel %vm572, %v559, %v585
          %v599 = vsel %vm573, %v560, %v586
          %v600 = vsel %vm574, %v561, %v587
          %v601 = vsel %vm575, %v562, %v588
          %v602 = vsel %vm576, %v563, %v589
          %v603 = vsel %vm577, %v564, %v590
          %v604 = vsel %vm578, %v565, %v591
          %v605 = vsel %vm579, %v566, %v592
          %606 = vst [vmem:[%s227] sm:$0xff] %v593
          %607 = vst [vmem:[%s227 + $0x8] sm:$0xff] %v594
          %608 = vst [vmem:[%s227 + $0x10] sm:$0xff] %v595
          %609 = vst [vmem:[%s227 + $0x18] sm:$0xff] %v596
          %610 = vst [vmem:[%s227 + $0x20] sm:$0xff] %v597
          %611 = vst [vmem:[%s227 + $0x28] sm:$0xff] %v598
          %612 = vst [vmem:[%s227 + $0x30] sm:$0xff] %v599
          %613 = vst [vmem:[%s227 + $0x38] sm:$0xff] %v600
          %614 = vst [vmem:[%s227 + $0x40] sm:$0xff] %v601
          %615 = vst [vmem:[%s227 + $0x48] sm:$0xff] %v602
          %616 = vst [vmem:[%s227 + $0x50] sm:$0xff] %v603
          %617 = vst [vmem:[%s227 + $0x58] sm:$0xff] %v604
          %618 = vst [vmem:[%s227 + $0x60] sm:$0xff] %v605
        $region60: #{tpu_custom_call.1} parent=35 // pred_fallthru
          _
        %s619 = sand.u32 %s131, 1
        %s620 = scalar_lea.sflag [#allocation8], %s619
        %s621 = sand.u32 %s131, 1
        %s622 = smul.addr %s621, 104
        %s623 = scalar_lea.vmem [#allocation11], %s622
        // Predicated region
        $region61: #{tpu_custom_call.1} parent=35 // pred_check
          %p624 = pneg %p141
        $region62: #{tpu_custom_call.1} parent=35 // pred_check_branch
          %626 = sbr.rel (%p624) target = $region64
        $region63: #{tpu_custom_call.1} parent=35 // pred_region
          %s627 = smul.u32 %s25, %s24
          %s628 = smul.u32 13, %s627
          %s630 = ssub.s32 1664, 1664
          %631 = vsyncadd %s620, %s630
          %s632 = smul.addr %s628, 128
          %s633 = scalar_lea.hbm %s4, %s632
          %s634 = sshll.u32 %s623, 4
          %s635 = int_to_ptr.vmem [resolvable:$true] %s634
          %640 = dma.vmem_to_hbm [thread:$0]  %s635, 1664, %s633, %s620, 128, 128, 8
        $region64: #{tpu_custom_call.1} parent=35 // pred_fallthru
          _
      $region36: #{tpu_custom_call.1} parent=5 // pred_fallthru
        _
      %p641 = scmp.le.s32.totalorder 2, %s15
      // Predicated region
      $region65: #{tpu_custom_call.1} parent=5 // pred_check
        %p642 = pneg %p641
      $region66: #{tpu_custom_call.1} parent=5 // pred_check_branch
        %644 = sbr.rel (%p642) target = $region68
      $region67: #{tpu_custom_call.1} parent=5 // pred_region
        %s645 = ssub.s32 %s15, 2
        // Predicated region
        $region69: #{tpu_custom_call.1} parent=67 // pred_check
          %p646 = pneg %p147
        $region70: #{tpu_custom_call.1} parent=67 // pred_check_branch
          %648 = sbr.rel (%p646) target = $region72
        $region71: #{tpu_custom_call.1} parent=67 // pred_region
          %s649 = sand.u32 %s132, 1
          %s650 = scalar_lea.sflag [#allocation8], %s649
          %s651 = sand.u32 %s132, 1
          %s652 = smul.addr %s651, 104
          %s653 = scalar_lea.vmem [#allocation11], %s652
          %654 = dma.done %s650, 1664
        $region72: #{tpu_custom_call.1} parent=67 // pred_fallthru
          _
      $region68: #{tpu_custom_call.1} parent=5 // pred_fallthru
        _
    $region6: #{tpu_custom_call.1} parent=1 // loop_footer
      %s19 = sadd.s32 1, %s15
    $region7: #{tpu_custom_call.1} parent=1 // loop_footer_branch
      %14 = sbr.rel target = $region3
    $region8: #{tpu_custom_call.1} parent=1 // loop_exit
      _
    %655 = vsyncpa [#allocation7], 1
    %s656 = scalar_lea.sflag [#allocation7], 1
    %657 = vsyncpa %s656, 1
    %658 = vsyncpa [#allocation10], 1
    %659 = vsyncpa [#allocation8], 1
    %s660 = scalar_lea.sflag [#allocation8], 1
    %661 = vsyncpa %s660, 1

</llo_original>
